<compile_context>
chip_gen: v7x
topology: tpu7x:2x2x1
jax: 0.10.0
libtpu: 0.0.40
codegen_flags: <defaults>
</compile_context>

<pallas_src>
import math

import jax
import jax.numpy as jnp
from jax.experimental import pallas as pl
from jax.experimental.pallas import tpu as pltpu


def _round_up(x, m):
    return ((x + m - 1) // m) * m


def _vmem_budget_bytes():
    """Generation-aware scoped-VMEM budget (headroom below physical capacity)."""
    try:
        cap = pltpu.get_tpu_info().vmem_capacity_bytes  # 128 MiB v5e/v6e, 64 MiB v7x
    except Exception:
        cap = 64 << 20
    # ~75% of physical: ~48 MiB on v7x, ~96 MiB on v5e/v6e.
    return int(cap * 3 // 4)


# ----------------------------- kernels --------------------------------------


def _fl_kernel_full_k(x_ref, w_ref, b_ref, o_ref):
    """Single K tile: whole contraction in one MXU pass, bias added once."""
    acc = jnp.dot(x_ref[...], w_ref[...], preferred_element_type=jnp.float32)
    o_ref[...] = (acc + b_ref[...].astype(jnp.float32)).astype(o_ref.dtype)


def _fl_kernel_ktiled_f32out(x_ref, w_ref, b_ref, o_ref):
    """K-tiled, f32 output: accumulate directly into the resident output block."""
    @pl.when(pl.program_id(2) == 0)
    def _():
        o_ref[...] = jnp.broadcast_to(b_ref[...].astype(o_ref.dtype), o_ref.shape)

    o_ref[...] += jnp.dot(x_ref[...], w_ref[...], preferred_element_type=jnp.float32)


def _fl_kernel_ktiled_scratch(x_ref, w_ref, b_ref, o_ref, acc_ref):
    """K-tiled, narrow output dtype: f32 VMEM accumulator, cast on finalize."""
    k = pl.program_id(2)

    @pl.when(k == 0)
    def _():
        acc_ref[...] = jnp.broadcast_to(b_ref[...].astype(jnp.float32), acc_ref.shape)

    acc_ref[...] += jnp.dot(x_ref[...], w_ref[...], preferred_element_type=jnp.float32)

    @pl.when(k == pl.num_programs(2) - 1)
    def _():
        o_ref[...] = acc_ref[...].astype(o_ref.dtype)


# --------------------------- wrapper / prep ---------------------------------


def prepare_filter_linear(weight, filter_square_matrix, bias=None, *,
                          compute_dtype=None, tn=512, tk=512, collapse_k=True):
    """One-time weight-side prep (mask, transpose, cast, pad).

    This is a full HBM pass over the K*N weight; hoisting it out of the
    per-call forward path matters for small-batch inference.  Returns a
    params dict consumed by filter_linear_apply().
    """
    N, K = weight.shape
    assert filter_square_matrix.shape == (N, K), "filter/weight shape mismatch"
    if bias is None:
        bias = jnp.zeros((N,), dtype=weight.dtype)

    # Mask applied once in the parameter dtype: no filter stream in the
    # kernel, and exact for any mask values (not just 0/1).
    w_masked_t = jnp.transpose(filter_square_matrix.astype(weight.dtype) * weight)  # (K, N)
    if compute_dtype is not None:
        w_masked_t = w_masked_t.astype(compute_dtype)

    itemsize = jnp.dtype(w_masked_t.dtype).itemsize
    budget = _vmem_budget_bytes()

    Kp128 = _round_up(K, 128)
    Np128 = _round_up(N, 128)
    tn = min(tn, Np128)
    tk = min(tk, Kp128)

    # Collapse the K grid axis when a full-K, double-buffered working set
    # (assuming tm up to 512) fits comfortably in the VMEM budget: removes
    # accumulator revisits and streams each weight tile from HBM exactly once.
    if collapse_k:
        tm_max = 512
        full_k_bytes = (2 * (tm_max * Kp128 + Kp128 * tn) * itemsize
                        + 2 * tm_max * tn * 4)
        if full_k_bytes <= budget // 2:
            tk = Kp128

    Kp = _round_up(Kp128, tk)
    Np = _round_up(Np128, tn)

    w_pad = jnp.pad(w_masked_t, ((0, Kp - K), (0, Np - N)))
    b_pad = jnp.pad(bias.reshape(1, N).astype(jnp.float32), ((0, 0), (0, Np - N)))

    return dict(w=w_pad, b=b_pad, N=N, K=K, tn=tn, tk=tk,
                compute_dtype=compute_dtype, vmem_budget=budget)


def filter_linear_apply(x, params, *, tm=512):
    """Forward pass: x @ (filter * weight).T + bias using prepared params."""
    B, K = x.shape
    assert K == params["K"], "in_features mismatch"
    N, tn, tk = params["N"], params["tn"], params["tk"]
    w, b = params["w"], params["b"]
    Kp, Np = w.shape
    compute_dtype = params["compute_dtype"]

    out_dtype = x.dtype
    if compute_dtype is not None:
        x = x.astype(compute_dtype)
    itemsize = jnp.dtype(x.dtype).itemsize
    out_itemsize = jnp.dtype(out_dtype).itemsize

    # Sublane alignment: 8 rows for 32-bit, 16 for bf16 packing.
    m_align = 16 if itemsize < 4 else 8
    Mp8 = _round_up(B, m_align)
    tm = max(m_align, min(tm, Mp8))

    # v7x has 2 TensorCores: ensure >=2 blocks on a 'parallel' axis so the
    # second core does not idle on small problems.
    if Mp8 <= tm and Np <= tn and Np >= 256:
        half = Np // 2
        tn = half if half % 128 == 0 else 128

    Mp = _round_up(Mp8, tm)
    if (Mp, Kp) != (B, K):
        x = jnp.pad(x, ((0, Mp - B), (0, Kp - K)))

    full_k = (tk == Kp)
    use_scratch = (not full_k) and jnp.dtype(out_dtype) != jnp.dtype(jnp.float32)

    if full_k:
        grid = (Mp // tm, Np // tn)
        kernel = _fl_kernel_full_k
        in_specs = [
            pl.BlockSpec((tm, Kp), lambda i, j: (i, 0)),   # x
            pl.BlockSpec((Kp, tn), lambda i, j: (0, j)),   # pre-masked weight^T
            pl.BlockSpec((1, tn), lambda i, j: (0, j)),    # bias
        ]
        out_specs = pl.BlockSpec((tm, tn), lambda i, j: (i, j))
        scratch_shapes = []
        semantics = ("parallel", "parallel")
    else:
        grid = (Mp // tm, Np // tn, Kp // tk)
        in_specs = [
            pl.BlockSpec((tm, tk), lambda i, j, k: (i, k)),   # x
            pl.BlockSpec((tk, tn), lambda i, j, k: (k, j)),   # pre-masked weight^T
            pl.BlockSpec((1, tn), lambda i, j, k: (0, j)),    # bias (resident over k)
        ]
        out_specs = pl.BlockSpec((tm, tn), lambda i, j, k: (i, j))
        semantics = ("parallel", "parallel", "arbitrary")
        if use_scratch:
            kernel = _fl_kernel_ktiled_scratch
            scratch_shapes = [pltpu.VMEM((tm, tn), jnp.float32)]
        else:
            kernel = _fl_kernel_ktiled_f32out
            scratch_shapes = []

    cost = pl.CostEstimate(
        flops=2 * Mp * Kp * Np,
        transcendentals=0,
        bytes_accessed=(Mp * Kp * itemsize + Kp * Np * itemsize
                        + Mp * Np * out_itemsize + Np * 4),
    )

    # Double-buffered tile bytes with headroom, capped at the per-generation
    # VMEM budget (~48 MiB v7x, ~96 MiB v5e/v6e).
    tile_bytes = (2 * tm * tk * itemsize
                  + 2 * tk * tn * itemsize
                  + 2 * tn * 4
                  + 2 * tm * tn * out_itemsize
                  + (tm * tn * 4 if use_scratch else 0))
    vmem_limit = int(min(max(2 * tile_bytes, 16 << 20), params["vmem_budget"]))

    out_padded = pl.pallas_call(
        kernel,
        out_shape=jax.ShapeDtypeStruct((Mp, Np), out_dtype),
        grid_spec=pltpu.PrefetchScalarGridSpec(
            num_scalar_prefetch=0,
            grid=grid,
            in_specs=in_specs,
            out_specs=out_specs,
            scratch_shapes=scratch_shapes,
        ),
        compiler_params=pltpu.CompilerParams(
            dimension_semantics=semantics,
            vmem_limit_bytes=vmem_limit,
        ),
        cost_estimate=cost,
    )(x, w, b)

    return out_padded[:B, :N]


def filter_linear(x, weight, filter_square_matrix, bias=None, *,
                  compute_dtype=None, tm=512, tn=512, tk=512, collapse_k=True):
    """Convenience one-shot path (prep + apply). Prefer prepare_* + apply when
    the weights / filter are static across calls."""
    params = prepare_filter_linear(weight, filter_square_matrix, bias,
                                   compute_dtype=compute_dtype, tn=tn, tk=tk,
                                   collapse_k=collapse_k)
    return filter_linear_apply(x, params, tm=tm)


if __name__ == "__main__":
    # TODO(synk): torch.cuda.empty_cache() / Variable(...).cuda() device
    # management have no Pallas equivalent and are no-ops here.

    key = jax.random.PRNGKey(0)

    # --- test 1: module-like shapes (square 0/1 filter), prepared-params path
    batch, in_features, out_features = 8, 32, 32
    k_x, k_w, k_b, k_f = jax.random.split(key, 4)
    stdv = 1.0 / math.sqrt(in_features)
    weight = jax.random.uniform(k_w, (out_features, in_features), jnp.float32, -stdv, stdv)
    bias = jax.random.uniform(k_b, (out_features,), jnp.float32, -stdv, stdv)
    filt = (jax.random.uniform(k_f, (out_features, in_features)) > 0.5).astype(jnp.float32)
    x = jax.random.normal(k_x, (batch, in_features), jnp.float32)

    params = prepare_filter_linear(weight, filt, bias)          # one-time weight prep
    out = jax.block_until_ready(filter_linear_apply(x, params))
    ref = x @ (filt * weight).T + bias
    assert out.shape == (batch, out_features)
    assert jnp.allclose(out, ref, atol=1e-5, rtol=1e-5)

    # --- test 2: non-aligned shapes exercise padding + single-K fast path ---
    B2, K2, N2 = 16, 300, 200
    k_x2, k_w2, k_b2, k_f2 = jax.random.split(jax.random.PRNGKey(1), 4)
    stdv2 = 1.0 / math.sqrt(K2)
    w2 = jax.random.uniform(k_w2, (N2, K2), jnp.float32, -stdv2, stdv2)
    b2 = jax.random.uniform(k_b2, (N2,), jnp.float32, -stdv2, stdv2)
    f2 = (jax.random.uniform(k_f2, (N2, K2)) > 0.5).astype(jnp.float32)
    x2 = jax.random.normal(k_x2, (B2, K2), jnp.float32)

    out2 = jax.block_until_ready(filter_linear(x2, w2, f2, b2))
    ref2 = x2 @ (f2 * w2).T + b2
    assert out2.shape == (B2, N2)
    assert jnp.allclose(out2, ref2, atol=1e-4, rtol=1e-4)

    # --- test 3: forced K-tiled path (f32 accumulation into resident o_ref) --
    B3, K3, N3 = 24, 384, 256
    k_x3, k_w3, k_b3, k_f3 = jax.random.split(jax.random.PRNGKey(2), 4)
    stdv3 = 1.0 / math.sqrt(K3)
    w3 = jax.random.uniform(k_w3, (N3, K3), jnp.float32, -stdv3, stdv3)
    b3 = jax.random.uniform(k_b3, (N3,), jnp.float32, -stdv3, stdv3)
    f3 = (jax.random.uniform(k_f3, (N3, K3)) > 0.5).astype(jnp.float32)
    x3 = jax.random.normal(k_x3, (B3, K3), jnp.float32)

    out3 = jax.block_until_ready(
        filter_linear(x3, w3, f3, b3, tk=128, collapse_k=False))
    ref3 = x3 @ (f3 * w3).T + b3
    assert out3.shape == (B3, N3)
    assert jnp.allclose(out3, ref3, atol=1e-4, rtol=1e-4)

    print("KERNEL_OK")
</pallas_src>

<mosaic_0001>
module attributes {stable_mosaic.version = 11 : i64} {
  func.func @_fl_kernel_full_k(%arg0: i32, %arg1: i32, %arg2: memref<8x128xf32, #tpu.memory_space<vmem>>, %arg3: memref<128x128xf32, #tpu.memory_space<vmem>>, %arg4: memref<1x128xf32, #tpu.memory_space<vmem>>, %arg5: memref<8x128xf32, #tpu.memory_space<vmem>>) attributes {dimension_semantics = [#tpu.dimension_semantics<parallel>, #tpu.dimension_semantics<parallel>], iteration_bounds = array<i64: 1, 1>, scalar_prefetch = 0 : i64, scratch_operands = 0 : i64, tpu.core_type = #tpu.core_type<tc>, window_params = [{transform_indices = @transform_0, window_bounds = array<i64: 8, 128>}, {transform_indices = @transform_1, window_bounds = array<i64: 128, 128>}, {transform_indices = @transform_2, window_bounds = array<i64: 1, 128>}, {transform_indices = @transform_3, window_bounds = array<i64: 8, 128>}]} {
    %c0 = arith.constant 0 : index
    %c0_0 = arith.constant 0 : index
    %0 = vector.load %arg2[%c0, %c0_0] : memref<8x128xf32, #tpu.memory_space<vmem>>, vector<8x128xf32>
    %c0_1 = arith.constant 0 : index
    %c0_2 = arith.constant 0 : index
    %1 = vector.load %arg3[%c0_1, %c0_2] : memref<128x128xf32, #tpu.memory_space<vmem>>, vector<128x128xf32>
    %cst = arith.constant dense<0.000000e+00> : vector<8x128xf32>
    %2 = tpu.matmul %0, %1, %cst {dimension_numbers = #tpu.dot_dimension_numbers<[1], [0], [0], [1], [0, 0, 1, 1], [], []>} : vector<8x128xf32>, vector<128x128xf32>, vector<8x128xf32> -> vector<8x128xf32>
    %c0_3 = arith.constant 0 : index
    %c0_4 = arith.constant 0 : index
    %3 = vector.load %arg4[%c0_3, %c0_4] : memref<1x128xf32, #tpu.memory_space<vmem>>, vector<1x128xf32>
    %4 = vector.broadcast %3 : vector<1x128xf32> to vector<8x128xf32>
    %5 = arith.addf %2, %4 : vector<8x128xf32>
    %c0_5 = arith.constant 0 : index
    %c0_6 = arith.constant 0 : index
    %6 = vector.load %arg5[%c0_5, %c0_6] : memref<8x128xf32, #tpu.memory_space<vmem>>, vector<8x128xf32>
    tpu.vector_store %arg5[%c0_5, %c0_6], %5 {strides = array<i32>} : memref<8x128xf32, #tpu.memory_space<vmem>>, vector<8x128xf32>,
    return
  }
  func.func @transform_0(%arg0: i32, %arg1: i32) -> (i32, i32) {
    %c0_i32 = arith.constant 0 : i32
    %c0_i32_0 = arith.constant 0 : i32
    return %arg0, %c0_i32 : i32, i32
  }
  func.func @transform_1(%arg0: i32, %arg1: i32) -> (i32, i32) {
    %c0_i32 = arith.constant 0 : i32
    %c0_i32_0 = arith.constant 0 : i32
    return %c0_i32, %arg1 : i32, i32
  }
  func.func @transform_2(%arg0: i32, %arg1: i32) -> (i32, i32) {
    %c0_i32 = arith.constant 0 : i32
    %c0_i32_0 = arith.constant 0 : i32
    return %c0_i32, %arg1 : i32, i32
  }
  func.func @transform_3(%arg0: i32, %arg1: i32) -> (i32, i32) {
    %c0_i32 = arith.constant 0 : i32
    return %arg0, %arg1 : i32, i32
  }
}

</mosaic_0001>

<llo_original>
// kernel: tpu_custom_call.1
$region0: #{tpu_custom_call.1}
  #allocation0 [shape = 'u32[]', space=smem, size = 0x4, offset = 0x4, fixed_abs, tag = 'smem constant byte address 0x4 - core index']
  #allocation1 [shape = 'u32[144,128]{1,0:T(1,128)}', space=vmem, size = 0x12000, scoped, tag = 'internal scratch']
  %s0 = inlined_call_operand.hbm [shape: f32[8,128], index: 0, kind: input, shape index: {}]
  %s1 = inlined_call_operand.hbm [shape: f32[128,128], index: 1, kind: input, shape index: {}]
  %s2 = inlined_call_operand.vmem [shape: f32[1,128], index: 2, kind: input, shape index: {}]
  %s3 = inlined_call_operand.hbm [shape: f32[8,128], index: 3, kind: output, shape index: {}]
  %s4 = sld [smem:[#allocation0]]
  $region30: #{tpu_custom_call.1} parent=0
    _
  %s6 = ssub.s32 1, %s4
  %s7 = scalar_select 0, %s6, %s4
  $region1: #{tpu_custom_call.1} parent=0
    #allocation2 [shape = 'u8[4096]{0}', space=vmem, size = 0x1000, scoped, tag = 'input window, operand 0, single buffered']
    #allocation3 [shape = 's32[1]{0}', space=sflag, size = 0x4, scoped, tag = 'scoped memory for tpu_custom_call.1']
    #allocation4 [shape = 's32[1]{0}', space=sflag, size = 0x4, scoped, tag = 'scoped memory for tpu_custom_call.1']
    #allocation5 [shape = 'u8[65536]{0}', space=vmem, size = 0x10000, scoped, tag = 'input window, operand 1, single buffered']
    #allocation6 [shape = 's32[1]{0}', space=sflag, size = 0x4, scoped, tag = 'scoped memory for tpu_custom_call.1']
    #allocation7 [shape = 'u8[4096]{0}', space=vmem, size = 0x1000, scoped, tag = 'output window, operand 0, single buffered']
    %8 = vsyncpa [#allocation3], 0
    %9 = vsyncpa [#allocation6], 0
    %10 = vsyncpa [#allocation4], 0
    // Predicated region
    $region2: #{tpu_custom_call.1} parent=1 // pred_check
      _
    $region3: #{tpu_custom_call.1} parent=1 // pred_check_branch
      %12 = sbr.rel (0) target = $region5
    $region4: #{tpu_custom_call.1} parent=1 // pred_region
      %s14 = ssub.s32 128, 128
      %15 = vsyncadd [#allocation3], %s14
      %s17 = sshll.u32 [#allocation2], 4
      %s18 = int_to_ptr.vmem [resolvable:$true] %s17
      %20 = dma.hbm_to_vmem [thread:$0]  %s0, 128, %s18, [#allocation3]
    $region5: #{tpu_custom_call.1} parent=1 // pred_fallthru
      _
    // Predicated region
    $region6: #{tpu_custom_call.1} parent=1 // pred_check
      _
    $region7: #{tpu_custom_call.1} parent=1 // pred_check_branch
      %22 = sbr.rel (0) target = $region9
    $region8: #{tpu_custom_call.1} parent=1 // pred_region
      %s24 = ssub.s32 2048, 2048
      %25 = vsyncadd [#allocation6], %s24
      %s26 = sshll.u32 [#allocation5], 4
      %s27 = int_to_ptr.vmem [resolvable:$true] %s26
      %32 = dma.hbm_to_vmem [thread:$0]  %s1, 2048, %s27, [#allocation6], 128, 128, 8
    $region9: #{tpu_custom_call.1} parent=1 // pred_fallthru
      _
    // Predicated region
    $region10: #{tpu_custom_call.1} parent=1 // pred_check
      _
    $region11: #{tpu_custom_call.1} parent=1 // pred_check_branch
      %34 = sbr.rel (0) target = $region13
    $region12: #{tpu_custom_call.1} parent=1 // pred_region
      _
    $region13: #{tpu_custom_call.1} parent=1 // pred_fallthru
      _
    // Predicated region
    $region14: #{tpu_custom_call.1} parent=1 // pred_check
      _
    $region15: #{tpu_custom_call.1} parent=1 // pred_check_branch
      %36 = sbr.rel (0) target = $region17
    $region16: #{tpu_custom_call.1} parent=1 // pred_region
      %37 = dma.done [#allocation3], 128
    $region17: #{tpu_custom_call.1} parent=1 // pred_fallthru
      _
    // Predicated region
    $region18: #{tpu_custom_call.1} parent=1 // pred_check
      _
    $region19: #{tpu_custom_call.1} parent=1 // pred_check_branch
      %39 = sbr.rel (0) target = $region21
    $region20: #{tpu_custom_call.1} parent=1 // pred_region
      %40 = dma.done [#allocation6], 2048
    $region21: #{tpu_custom_call.1} parent=1 // pred_fallthru
      _
    %v41 = vld [vmem:[#allocation2] sm:$0xff]
    %v42 = vld [vmem:[#allocation5] sm:$0xff]
    %v43 = vld [vmem:[#allocation5 + $0x8] sm:$0xff]
    %v44 = vld [vmem:[#allocation5 + $0x10] sm:$0xff]
    %v45 = vld [vmem:[#allocation5 + $0x18] sm:$0xff]
    %v46 = vld [vmem:[#allocation5 + $0x20] sm:$0xff]
    %v47 = vld [vmem:[#allocation5 + $0x28] sm:$0xff]
    %v48 = vld [vmem:[#allocation5 + $0x30] sm:$0xff]
    %v49 = vld [vmem:[#allocation5 + $0x38] sm:$0xff]
    %v50 = vld [vmem:[#allocation5 + $0x40] sm:$0xff]
    %v51 = vld [vmem:[#allocation5 + $0x48] sm:$0xff]
    %v52 = vld [vmem:[#allocation5 + $0x50] sm:$0xff]
    %v53 = vld [vmem:[#allocation5 + $0x58] sm:$0xff]
    %v54 = vld [vmem:[#allocation5 + $0x60] sm:$0xff]
    %v55 = vld [vmem:[#allocation5 + $0x68] sm:$0xff]
    %v56 = vld [vmem:[#allocation5 + $0x70] sm:$0xff]
    %v57 = vld [vmem:[#allocation5 + $0x78] sm:$0xff]
    %v58 = vld [vmem:[%s2] sm:$0x1]
    %v60 = vlaneseq
    %v61 = vshrl.u32 %v60, 7
    %v62 = vsub.s32 0, %v61
    %v63 = vrot.slane %v58, %v62
    %65 = vmatprep.subr.mxu0 0.0
    %66 = vmatpush1.msra.mxu0 %v42
    %67 = vmatprep.subr.mxu0 0.0
    %68 = vmatpush1.msra.mxu0 %v43
    %69 = vmatprep.subr.mxu0 0.0
    %70 = vmatpush1.msra.mxu0 %v44
    %71 = vmatprep.subr.mxu0 0.0
    %72 = vmatpush1.msra.mxu0 %v45
    %73 = vmatprep.subr.mxu0 0.0
    %74 = vmatpush1.msra.mxu0 %v46
    %75 = vmatprep.subr.mxu0 0.0
    %76 = vmatpush1.msra.mxu0 %v47
    %77 = vmatprep.subr.mxu0 0.0
    %78 = vmatpush1.msra.mxu0 %v48
    %79 = vmatprep.subr.mxu0 0.0
    %80 = vmatpush1.msra.mxu0 %v49
    %81 = vmatprep.subr.mxu0 0.0
    %82 = vmatpush1.msra.mxu0 %v50
    %83 = vmatprep.subr.mxu0 0.0
    %84 = vmatpush1.msra.mxu0 %v51
    %85 = vmatprep.subr.mxu0 0.0
    %86 = vmatpush1.msra.mxu0 %v52
    %87 = vmatprep.subr.mxu0 0.0
    %88 = vmatpush1.msra.mxu0 %v53
    %89 = vmatprep.subr.mxu0 0.0
    %90 = vmatpush1.msra.mxu0 %v54
    %91 = vmatprep.subr.mxu0 0.0
    %92 = vmatpush1.msra.mxu0 %v55
    %93 = vmatprep.subr.mxu0 0.0
    %94 = vmatpush1.msra.mxu0 %v56
    %95 = vmatprep.subr.mxu0 0.0
    %96 = vmatpush1.msra.mxu0 %v57
    %97 = vmatprep.subr.mxu0 0.0
    %98 = vmatpush1.msra.mxu0 0.0
    %99 = vmatprep.subr.mxu0 0.0
    %100 = vmatpush1.msra.mxu0 0.0
    %101 = vmatprep.subr.mxu0 0.0
    %102 = vmatpush1.msra.mxu0 0.0
    %103 = vmatprep.subr.mxu0 0.0
    %104 = vmatpush1.msra.mxu0 0.0
    %105 = vmatprep.subr.mxu0 0.0
    %106 = vmatpush1.msra.mxu0 0.0
    %107 = vmatprep.subr.mxu0 0.0
    %108 = vmatpush1.msra.mxu0 0.0
    %109 = vmatprep.subr.mxu0 0.0
    %110 = vmatpush1.msra.mxu0 0.0
    %111 = vmatprep.subr.mxu0 0.0
    %112 = vmatpush1.msra.mxu0 0.0
    %113 = vmatprep.subr.mxu0 0.0
    %114 = vmatpush1.msra.mxu0 0.0
    %115 = vmatprep.subr.mxu0 0.0
    %116 = vmatpush1.msra.mxu0 0.0
    %117 = vmatprep.subr.mxu0 0.0
    %118 = vmatpush1.msra.mxu0 0.0
    %119 = vmatprep.subr.mxu0 0.0
    %120 = vmatpush1.msra.mxu0 0.0
    %121 = vmatprep.subr.mxu0 0.0
    %122 = vmatpush1.msra.mxu0 0.0
    %123 = vmatprep.subr.mxu0 0.0
    %124 = vmatpush1.msra.mxu0 0.0
    %125 = vmatprep.subr.mxu0 0.0
    %126 = vmatpush1.msra.mxu0 0.0
    %127 = vmatprep.subr.mxu0 0.0
    %128 = vmatpush1.msra.mxu0 0.0
    %129 = vmatprep.mubr.f32.mxu0 0.0
    %130 = vmatmul.mubr.f32.gmra.mrb[0].mxu0 %v41
    %v131 = vpop.f32.mrb[0].mxu0
    %v132 = vadd.f32 %v63, %v131
    %v133 = vpop.f32.mrb[0].mxu0
    %134 = vdwg.mxu0
    %135 = vst [vmem:[#allocation7] sm:$0xff] %v132
    // Predicated region
    $region22: #{tpu_custom_call.1} parent=1 // pred_check
      _
    $region23: #{tpu_custom_call.1} parent=1 // pred_check_branch
      %137 = sbr.rel (0) target = $region25
    $region24: #{tpu_custom_call.1} parent=1 // pred_region
      %s139 = ssub.s32 128, 128
      %140 = vsyncadd [#allocation4], %s139
      %s142 = sshll.u32 [#allocation7], 4
      %s143 = int_to_ptr.vmem [resolvable:$true] %s142
      %145 = dma.vmem_to_hbm [thread:$0]  %s143, 128, %s3, [#allocation4]
    $region25: #{tpu_custom_call.1} parent=1 // pred_fallthru
      _
    // Predicated region
    $region26: #{tpu_custom_call.1} parent=1 // pred_check
      _
    $region27: #{tpu_custom_call.1} parent=1 // pred_check_branch
      %147 = sbr.rel (0) target = $region29
    $region28: #{tpu_custom_call.1} parent=1 // pred_region
      %148 = dma.done [#allocation4], 128
    $region29: #{tpu_custom_call.1} parent=1 // pred_fallthru
      _
    %149 = vsyncpa [#allocation3], 1
    %150 = vsyncpa [#allocation6], 1
    %151 = vsyncpa [#allocation4], 1

</llo_original>
